<compile_context>
chip_gen: v7x
topology: tpu7x:2x2x1
jax: 0.10.0
libtpu: 0.0.40
codegen_flags: <defaults>
</compile_context>

<pallas_src>
import functools
import math

import jax
import jax.numpy as jnp
from jax import lax
from jax.experimental import pallas as pl
from jax.experimental.pallas import tpu as pltpu


def _round_up(x, m):
    return (x + m - 1) // m * m


def _erf(x):
    # Abramowitz & Stegun 7.1.26 (|err| < 1.5e-7, far below bf16 noise) built
    # only from ops with guaranteed Mosaic lowerings (exp / mul / add / where).
    a1, a2, a3, a4, a5 = (0.254829592, -0.284496736, 1.421413741,
                          -1.453152027, 1.061405429)
    p = 0.3275911
    ax = jnp.abs(x)
    t = 1.0 / (1.0 + p * ax)
    poly = ((((a5 * t + a4) * t + a3) * t + a2) * t + a1) * t
    y = 1.0 - poly * jnp.exp(-ax * ax)
    return jnp.where(x < 0, -y, y)


def _gelu(h, approximate):
    if approximate:
        # tanh-form GELU: transcendental goes to the EUP slot (free under MXU).
        c = math.sqrt(2.0 / math.pi)
        return 0.5 * h * (1.0 + jnp.tanh(c * (h + 0.044715 * h * h * h)))
    # Exact erf GELU: matches nn.GELU() default.
    return 0.5 * h * (1.0 + _erf(h * (1.0 / math.sqrt(2.0))))


# ---------------------------------------------------------------------------
# Device / tiling plan
# ---------------------------------------------------------------------------
def _device_info():
    kind = ""
    try:
        kind = jax.devices()[0].device_kind.lower()
    except Exception:
        pass
    vmem_cap = 0
    try:
        info_fn = getattr(pltpu, "get_tpu_info", None)
        if info_fn is not None:
            vmem_cap = int(getattr(info_fn(), "vmem_capacity_bytes", 0) or 0)
    except Exception:
        vmem_cap = 0
    if vmem_cap <= 0:
        vmem_cap = 64 * 1024 * 1024  # conservative: safe on every generation
    return kind, vmem_cap, ("v5" in kind), ("v7" in kind)


def _plan_tiles(n_hint, din, hid, dout, mxu_itemsize, out_itemsize):
    _, vmem_cap, is_v5, is_v7 = _device_info()
    # v5e MXU is 128x128; v6e/v7x are 256x256 -> 256-aligned feature tiles there.
    align = 128 if is_v5 else 256

    din_p = _round_up(din, align)
    hid_p = _round_up(hid, align)
    dout_p = _round_up(dout, align)

    # Token tile: big on 128-MiB-VMEM chips (v5e/v6e) to amortize weight
    # streaming; moderate on v7x (64 MiB).  Shrink for tiny inputs.
    tile_m = 512 if vmem_cap >= 96 * 1024 * 1024 else 256
    tile_m = max(8, min(tile_m, _round_up(max(n_hint, 1), 8)))

    budget = int(vmem_cap * 0.80)

    def est(tm, td, th):
        return (2 * tm * td * mxu_itemsize          # x tile (double-buffered)
                + 2 * td * th * mxu_itemsize        # w1 slice
                + 2 * th * dout_p * mxu_itemsize    # w2 slice
                + 2 * (th + dout_p) * 4             # biases
                + 2 * tm * dout_p * out_itemsize    # output tile
                + 2 * tm * th * 4                   # f32 hidden (acc + live temp)
                + tm * dout_p * 4)                  # f32 output accumulator

    # Start with fully VMEM-resident weights; shrink hidden, then din, then
    # tokens until the working set fits the budget.
    tile_d, tile_h = din_p, hid_p
    while est(tile_m, tile_d, tile_h) > budget:
        if tile_h > align and tile_h >= tile_d:
            tile_h = max(align, _round_up(tile_h // 2, align))
        elif tile_d > align:
            tile_d = max(align, _round_up(tile_d // 2, align))
        elif tile_m > 64:
            tile_m = max(8, _round_up(tile_m // 2, 8))
        else:
            break

    hid_p = _round_up(hid_p, tile_h)
    din_p = _round_up(din_p, tile_d)

    vmem_limit = int(min(vmem_cap * 0.85,
                         max(1.25 * est(tile_m, tile_d, tile_h),
                             32 * 1024 * 1024)))

    return dict(align=align, is_v7=is_v7,
                din_p=din_p, hid_p=hid_p, dout_p=dout_p,
                tile_m=tile_m, tile_d=tile_d, tile_h=tile_h,
                vmem_limit=vmem_limit)


# ---------------------------------------------------------------------------
# Kernels (specialized on the static tiling structure)
# ---------------------------------------------------------------------------
def _kernel_resident(approx, x_ref, w1_ref, b1_ref, w2_ref, b2_ref, o_ref):
    # Weights fully VMEM-resident: single fused fc1 -> GELU -> fc2 per token tile.
    h = jnp.dot(x_ref[...], w1_ref[...], preferred_element_type=jnp.float32)
    h = _gelu(h + b1_ref[...], approx)
    out = jnp.dot(h.astype(w2_ref.dtype), w2_ref[...],
                  preferred_element_type=jnp.float32)
    o_ref[...] = (out + b2_ref[...]).astype(o_ref.dtype)


def _kernel_htiled(approx, h_tiles, x_ref, w1_ref, b1_ref, w2_ref, b2_ref,
                   o_ref, out_acc):
    # Hidden dim tiled; fc2 partials accumulated in f32 scratch.
    j = pl.program_id(1)
    h = jnp.dot(x_ref[...], w1_ref[...], preferred_element_type=jnp.float32)
    h = _gelu(h + b1_ref[...], approx)
    part = jnp.dot(h.astype(w2_ref.dtype), w2_ref[...],
                   preferred_element_type=jnp.float32)

    @pl.when(j == 0)
    def _():
        out_acc[...] = part            # direct write: no zero-init round trip

    @pl.when(j > 0)
    def _():
        out_acc[...] += part

    @pl.when(j == h_tiles - 1)
    def _():
        o_ref[...] = (out_acc[...] + b2_ref[...]).astype(o_ref.dtype)


def _kernel_hdtiled(approx, h_tiles, d_tiles, x_ref, w1_ref, b1_ref, w2_ref,
                    b2_ref, o_ref, h_acc, out_acc):
    # Both hidden and din tiled (very large in_features).
    j = pl.program_id(1)
    k = pl.program_id(2)
    p = jnp.dot(x_ref[...], w1_ref[...], preferred_element_type=jnp.float32)

    @pl.when(k == 0)
    def _():
        h_acc[...] = p

    @pl.when(k > 0)
    def _():
        h_acc[...] += p

    @pl.when(k == d_tiles - 1)
    def _():
        h = _gelu(h_acc[...] + b1_ref[...], approx)
        part = jnp.dot(h.astype(w2_ref.dtype), w2_ref[...],
                       preferred_element_type=jnp.float32)

        @pl.when(j == 0)
        def _():
            out_acc[...] = part

        @pl.when(j > 0)
        def _():
            out_acc[...] += part

        @pl.when(j == h_tiles - 1)
        def _():
            o_ref[...] = (out_acc[...] + b2_ref[...]).astype(o_ref.dtype)


# ---------------------------------------------------------------------------
# Wrappers
# ---------------------------------------------------------------------------
def prepare_mlp_params(w1, b1, w2, b2, *, n_hint=1024,
                       mxu_dtype=jnp.bfloat16, out_dtype=jnp.float32):
    """Pad + cast the weights ONCE (hoisted out of the per-call path)."""
    din, hid = w1.shape
    hid2, dout = w2.shape
    assert hid2 == hid and b1.shape == (hid,) and b2.shape == (dout,)

    plan = _plan_tiles(n_hint, din, hid, dout,
                       jnp.dtype(mxu_dtype).itemsize,
                       jnp.dtype(out_dtype).itemsize)
    din_p, hid_p, dout_p = plan["din_p"], plan["hid_p"], plan["dout_p"]

    # Zero padding is numerically exact: padded hidden units see zero
    # pre-activation (GELU(0)=0) and padded output columns are sliced off.
    w1_p = jnp.pad(w1, ((0, din_p - din), (0, hid_p - hid))).astype(mxu_dtype)
    w2_p = jnp.pad(w2, ((0, hid_p - hid), (0, dout_p - dout))).astype(mxu_dtype)
    b1_p = jnp.pad(b1, (0, hid_p - hid)).reshape(1, hid_p).astype(jnp.float32)
    b2_p = jnp.pad(b2, (0, dout_p - dout)).reshape(1, dout_p).astype(jnp.float32)

    return dict(plan=plan, din=din, hid=hid, dout=dout, mxu_dtype=mxu_dtype,
                w1=w1_p, b1=b1_p, w2=w2_p, b2=b2_p)


def mlp_pallas_apply(x, params, *, approximate_gelu=False):
    plan = params["plan"]
    din, hid, dout = params["din"], params["hid"], params["dout"]
    orig_shape = x.shape
    assert orig_shape[-1] == din
    x2 = x.reshape(-1, din)
    n = x2.shape[0]
    out_dtype = x.dtype

    din_p, hid_p, dout_p = plan["din_p"], plan["hid_p"], plan["dout_p"]
    tile_d, tile_h = plan["tile_d"], plan["tile_h"]

    tile_m = max(8, min(plan["tile_m"], _round_up(n, 8)))
    # v7x has 2 TensorCores: make sure the "parallel" token axis has >= 2 tiles.
    if plan["is_v7"] and n > 8 and _round_up(n, tile_m) // tile_m < 2:
        tile_m = max(8, _round_up((n + 1) // 2, 8))
    n_p = _round_up(n, tile_m)

    x_p = jnp.pad(x2, ((0, n_p - n), (0, din_p - din))).astype(params["mxu_dtype"])
    w1_p, b1_p, w2_p, b2_p = params["w1"], params["b1"], params["w2"], params["b2"]

    i_tiles = n_p // tile_m
    h_tiles = hid_p // tile_h
    d_tiles = din_p // tile_d
    itemsize = x_p.dtype.itemsize

    # Advisory cost model.  Resident weights are streamed once; otherwise they
    # are re-streamed for every token tile (the exact thing the plan avoids).
    weights_resident = (h_tiles == 1 and d_tiles == 1)
    weight_bytes = (w1_p.size + w2_p.size) * itemsize
    cost = pl.CostEstimate(
        flops=2 * n * (din * hid + hid * dout),
        transcendentals=n * hid,
        bytes_accessed=int(x_p.size * itemsize * h_tiles
                           + weight_bytes * (1 if weights_resident else i_tiles)
                           + (b1_p.size + b2_p.size) * 4
                           + n_p * dout_p * jnp.dtype(out_dtype).itemsize),
    )

    if weights_resident:
        grid = (i_tiles,)
        in_specs = [
            pl.BlockSpec((tile_m, din_p), lambda i: (i, 0)),
            pl.BlockSpec((din_p, hid_p), lambda i: (0, 0)),   # fetched once
            pl.BlockSpec((1, hid_p), lambda i: (0, 0)),
            pl.BlockSpec((hid_p, dout_p), lambda i: (0, 0)),  # fetched once
            pl.BlockSpec((1, dout_p), lambda i: (0, 0)),
        ]
        out_spec = pl.BlockSpec((tile_m, dout_p), lambda i: (i, 0))
        scratch = []
        kernel = functools.partial(_kernel_resident, approximate_gelu)
        semantics = ("parallel",)
    elif d_tiles == 1:
        grid = (i_tiles, h_tiles)
        in_specs = [
            pl.BlockSpec((tile_m, din_p), lambda i, j: (i, 0)),
            pl.BlockSpec((din_p, tile_h), lambda i, j: (0, j)),
            pl.BlockSpec((1, tile_h), lambda i, j: (0, j)),
            pl.BlockSpec((tile_h, dout_p), lambda i, j: (j, 0)),
            pl.BlockSpec((1, dout_p), lambda i, j: (0, 0)),
        ]
        out_spec = pl.BlockSpec((tile_m, dout_p), lambda i, j: (i, 0))
        scratch = [pltpu.VMEM((tile_m, dout_p), jnp.float32)]
        kernel = functools.partial(_kernel_htiled, approximate_gelu, h_tiles)
        semantics = ("parallel", "arbitrary")
    else:
        grid = (i_tiles, h_tiles, d_tiles)
        in_specs = [
            pl.BlockSpec((tile_m, tile_d), lambda i, j, k: (i, k)),
            pl.BlockSpec((tile_d, tile_h), lambda i, j, k: (k, j)),
            pl.BlockSpec((1, tile_h), lambda i, j, k: (0, j)),
            pl.BlockSpec((tile_h, dout_p), lambda i, j, k: (j, 0)),
            pl.BlockSpec((1, dout_p), lambda i, j, k: (0, 0)),
        ]
        out_spec = pl.BlockSpec((tile_m, dout_p), lambda i, j, k: (i, 0))
        scratch = [pltpu.VMEM((tile_m, tile_h), jnp.float32),
                   pltpu.VMEM((tile_m, dout_p), jnp.float32)]
        kernel = functools.partial(_kernel_hdtiled, approximate_gelu,
                                   h_tiles, d_tiles)
        semantics = ("parallel", "arbitrary", "arbitrary")

    out = pl.pallas_call(
        kernel,
        out_shape=jax.ShapeDtypeStruct((n_p, dout_p), out_dtype),
        grid_spec=pltpu.PrefetchScalarGridSpec(
            num_scalar_prefetch=0,
            grid=grid,
            in_specs=in_specs,
            out_specs=out_spec,
            scratch_shapes=scratch,
        ),
        compiler_params=pltpu.CompilerParams(
            dimension_semantics=semantics,
            vmem_limit_bytes=plan["vmem_limit"],
        ),
        cost_estimate=cost,
    )(x_p, w1_p, b1_p, w2_p, b2_p)

    return out[:n, :dout].reshape(*orig_shape[:-1], dout)


def mlp_pallas(x, w1, b1, w2, b2, *, approximate_gelu=False,
               mxu_dtype=jnp.bfloat16):
    """Convenience one-shot wrapper (prepares params per call)."""
    n = 1
    for s in x.shape[:-1]:
        n *= s
    params = prepare_mlp_params(w1, b1, w2, b2, n_hint=n,
                                mxu_dtype=mxu_dtype, out_dtype=x.dtype)
    return mlp_pallas_apply(x, params, approximate_gelu=approximate_gelu)


# ---------------------------------------------------------------------------
# Reference + test
# ---------------------------------------------------------------------------
def init_linear(key, fan_in, fan_out):
    # Deterministic init mimicking torch.nn.Linear defaults.
    kw, kb = jax.random.split(key)
    bound = 1.0 / math.sqrt(fan_in)
    w = jax.random.uniform(kw, (fan_in, fan_out), jnp.float32, -bound, bound)
    b = jax.random.uniform(kb, (fan_out,), jnp.float32, -bound, bound)
    return w, b


def mlp_reference(x, w1, b1, w2, b2):
    # Exact-erf GELU, f32 -- matches the PyTorch module semantics.
    h = x @ w1 + b1
    h = 0.5 * h * (1.0 + lax.erf(h / jnp.sqrt(2.0)))
    return h @ w2 + b2


if __name__ == "__main__":
    B, S, DIN, HID, DOUT = 2, 8, 32, 64, 32

    key = jax.random.PRNGKey(0)
    kx, k1, k2 = jax.random.split(key, 3)
    x = jax.random.normal(kx, (B, S, DIN), jnp.float32)
    w1, b1 = init_linear(k1, DIN, HID)
    w2, b2 = init_linear(k2, HID, DOUT)

    # Weights padded / bf16-cast once, then applied (hoisted out of the call).
    params = prepare_mlp_params(w1, b1, w2, b2, n_hint=B * S, out_dtype=x.dtype)
    out = mlp_pallas_apply(x, params)
    out = jax.block_until_ready(out)

    ref = mlp_reference(x.reshape(-1, DIN), w1, b1, w2, b2).reshape(B, S, DOUT)
    assert out.shape == (B, S, DOUT)
    # bf16 MXU operands vs f32 reference -> loosened tolerance.
    max_err = float(jnp.max(jnp.abs(out - ref)))
    rel_err = float(jnp.linalg.norm(out - ref) / jnp.linalg.norm(ref))
    assert max_err < 5e-2 and rel_err < 2e-2, (max_err, rel_err)

    print("KERNEL_OK")
</pallas_src>

<mosaic_0001>
module attributes {stable_mosaic.version = 11 : i64} {
  func.func @_kernel_resident(%arg0: i32, %arg1: memref<16x256xbf16, #tpu.memory_space<vmem>>, %arg2: memref<256x256xbf16, #tpu.memory_space<vmem>>, %arg3: memref<1x256xf32, #tpu.memory_space<vmem>>, %arg4: memref<256x256xbf16, #tpu.memory_space<vmem>>, %arg5: memref<1x256xf32, #tpu.memory_space<vmem>>, %arg6: memref<16x256xf32, #tpu.memory_space<vmem>>) attributes {dimension_semantics = [#tpu.dimension_semantics<parallel>], iteration_bounds = array<i64: 1>, scalar_prefetch = 0 : i64, scratch_operands = 0 : i64, tpu.core_type = #tpu.core_type<tc>, window_params = [{transform_indices = @transform_0, window_bounds = array<i64: 16, 256>}, {pipeline_mode = #tpu.pipeline_mode<synchronous>, transform_indices = @transform_1, window_bounds = array<i64: 256, 256>}, {pipeline_mode = #tpu.pipeline_mode<synchronous>, transform_indices = @transform_2, window_bounds = array<i64: 1, 256>}, {pipeline_mode = #tpu.pipeline_mode<synchronous>, transform_indices = @transform_3, window_bounds = array<i64: 256, 256>}, {pipeline_mode = #tpu.pipeline_mode<synchronous>, transform_indices = @transform_4, window_bounds = array<i64: 1, 256>}, {transform_indices = @transform_5, window_bounds = array<i64: 16, 256>}]} {
    %c0 = arith.constant 0 : index
    %c0_0 = arith.constant 0 : index
    %0 = vector.load %arg1[%c0, %c0_0] : memref<16x256xbf16, #tpu.memory_space<vmem>>, vector<16x256xbf16>
    %c0_1 = arith.constant 0 : index
    %c0_2 = arith.constant 0 : index
    %1 = vector.load %arg2[%c0_1, %c0_2] : memref<256x256xbf16, #tpu.memory_space<vmem>>, vector<256x256xbf16>
    %cst = arith.constant dense<0.000000e+00> : vector<16x256xf32>
    %2 = tpu.matmul %0, %1, %cst {dimension_numbers = #tpu.dot_dimension_numbers<[1], [0], [0], [1], [0, 0, 1, 1], [], []>} : vector<16x256xbf16>, vector<256x256xbf16>, vector<16x256xf32> -> vector<16x256xf32>
    %c0_3 = arith.constant 0 : index
    %c0_4 = arith.constant 0 : index
    %3 = vector.load %arg3[%c0_3, %c0_4] : memref<1x256xf32, #tpu.memory_space<vmem>>, vector<1x256xf32>
    %4 = vector.broadcast %3 : vector<1x256xf32> to vector<16x256xf32>
    %5 = arith.addf %2, %4 : vector<16x256xf32>
    %cst_5 = arith.constant 5.000000e-01 : f32
    %6 = vector.broadcast %cst_5 : f32 to vector<16x256xf32>
    %7 = arith.mulf %6, %5 : vector<16x256xf32>
    %cst_6 = arith.constant 0.707106769 : f32
    %8 = vector.broadcast %cst_6 : f32 to vector<16x256xf32>
    %9 = arith.mulf %5, %8 : vector<16x256xf32>
    %10 = math.absf %9 : vector<16x256xf32>
    %cst_7 = arith.constant 0.327591091 : f32
    %11 = vector.broadcast %cst_7 : f32 to vector<16x256xf32>
    %12 = arith.mulf %11, %10 : vector<16x256xf32>
    %cst_8 = arith.constant 1.000000e+00 : f32
    %13 = vector.broadcast %cst_8 : f32 to vector<16x256xf32>
    %14 = arith.addf %13, %12 : vector<16x256xf32>
    %cst_9 = arith.constant 1.000000e+00 : f32
    %15 = vector.broadcast %cst_9 : f32 to vector<16x256xf32>
    %16 = arith.divf %15, %14 : vector<16x256xf32>
    %cst_10 = arith.constant 1.06140542 : f32
    %17 = vector.broadcast %cst_10 : f32 to vector<16x256xf32>
    %18 = arith.mulf %17, %16 : vector<16x256xf32>
    %cst_11 = arith.constant -1.45315206 : f32
    %19 = vector.broadcast %cst_11 : f32 to vector<16x256xf32>
    %20 = arith.addf %18, %19 : vector<16x256xf32>
    %21 = arith.mulf %20, %16 : vector<16x256xf32>
    %cst_12 = arith.constant 1.42141378 : f32
    %22 = vector.broadcast %cst_12 : f32 to vector<16x256xf32>
    %23 = arith.addf %21, %22 : vector<16x256xf32>
    %24 = arith.mulf %23, %16 : vector<16x256xf32>
    %cst_13 = arith.constant -0.284496725 : f32
    %25 = vector.broadcast %cst_13 : f32 to vector<16x256xf32>
    %26 = arith.addf %24, %25 : vector<16x256xf32>
    %27 = arith.mulf %26, %16 : vector<16x256xf32>
    %cst_14 = arith.constant 0.254829586 : f32
    %28 = vector.broadcast %cst_14 : f32 to vector<16x256xf32>
    %29 = arith.addf %27, %28 : vector<16x256xf32>
    %30 = arith.mulf %29, %16 : vector<16x256xf32>
    %cst_15 = arith.constant 0.000000e+00 : f32
    %31 = vector.broadcast %cst_15 : f32 to vector<16x256xf32>
    %32 = arith.subf %31, %10 : vector<16x256xf32>
    %33 = arith.mulf %32, %10 : vector<16x256xf32>
    %34 = math.exp %33 : vector<16x256xf32>
    %35 = arith.mulf %30, %34 : vector<16x256xf32>
    %cst_16 = arith.constant 1.000000e+00 : f32
    %36 = vector.broadcast %cst_16 : f32 to vector<16x256xf32>
    %37 = arith.subf %36, %35 : vector<16x256xf32>
    %cst_17 = arith.constant 0.000000e+00 : f32
    %38 = vector.broadcast %cst_17 : f32 to vector<16x256xf32>
    %39 = arith.cmpf olt, %9, %38 : vector<16x256xf32>
    %cst_18 = arith.constant 0.000000e+00 : f32
    %40 = vector.broadcast %cst_18 : f32 to vector<16x256xf32>
    %41 = arith.subf %40, %37 : vector<16x256xf32>
    %42 = arith.select %39, %41, %37 : vector<16x256xi1>, vector<16x256xf32>
    %cst_19 = arith.constant 1.000000e+00 : f32
    %43 = vector.broadcast %cst_19 : f32 to vector<16x256xf32>
    %44 = arith.addf %43, %42 : vector<16x256xf32>
    %45 = arith.mulf %7, %44 : vector<16x256xf32>
    %46 = arith.truncf %45 : vector<16x256xf32> to vector<16x256xbf16>
    %c0_20 = arith.constant 0 : index
    %c0_21 = arith.constant 0 : index
    %47 = vector.load %arg4[%c0_20, %c0_21] : memref<256x256xbf16, #tpu.memory_space<vmem>>, vector<256x256xbf16>
    %cst_22 = arith.constant dense<0.000000e+00> : vector<16x256xf32>
    %48 = tpu.matmul %46, %47, %cst_22 {dimension_numbers = #tpu.dot_dimension_numbers<[1], [0], [0], [1], [0, 0, 1, 1], [], []>} : vector<16x256xbf16>, vector<256x256xbf16>, vector<16x256xf32> -> vector<16x256xf32>
    %c0_23 = arith.constant 0 : index
    %c0_24 = arith.constant 0 : index
    %49 = vector.load %arg5[%c0_23, %c0_24] : memref<1x256xf32, #tpu.memory_space<vmem>>, vector<1x256xf32>
    %50 = vector.broadcast %49 : vector<1x256xf32> to vector<16x256xf32>
    %51 = arith.addf %48, %50 : vector<16x256xf32>
    %c0_25 = arith.constant 0 : index
    %c0_26 = arith.constant 0 : index
    %52 = vector.load %arg6[%c0_25, %c0_26] : memref<16x256xf32, #tpu.memory_space<vmem>>, vector<16x256xf32>
    tpu.vector_store %arg6[%c0_25, %c0_26], %51 {strides = array<i32>} : memref<16x256xf32, #tpu.memory_space<vmem>>, vector<16x256xf32>,
    return
  }
  func.func @transform_0(%arg0: i32) -> (i32, i32) {
    %c0_i32 = arith.constant 0 : i32
    %c0_i32_0 = arith.constant 0 : i32
    return %arg0, %c0_i32 : i32, i32
  }
  func.func @transform_1(%arg0: i32) -> (i32, i32) {
    %c0_i32 = arith.constant 0 : i32
    %c0_i32_0 = arith.constant 0 : i32
    %c0_i32_1 = arith.constant 0 : i32
    return %c0_i32, %c0_i32_0 : i32, i32
  }
  func.func @transform_2(%arg0: i32) -> (i32, i32) {
    %c0_i32 = arith.constant 0 : i32
    %c0_i32_0 = arith.constant 0 : i32
    %c0_i32_1 = arith.constant 0 : i32
    return %c0_i32, %c0_i32_0 : i32, i32
  }
  func.func @transform_3(%arg0: i32) -> (i32, i32) {
    %c0_i32 = arith.constant 0 : i32
    %c0_i32_0 = arith.constant 0 : i32
    %c0_i32_1 = arith.constant 0 : i32
    return %c0_i32, %c0_i32_0 : i32, i32
  }
  func.func @transform_4(%arg0: i32) -> (i32, i32) {
    %c0_i32 = arith.constant 0 : i32
    %c0_i32_0 = arith.constant 0 : i32
    %c0_i32_1 = arith.constant 0 : i32
    return %c0_i32, %c0_i32_0 : i32, i32
  }
  func.func @transform_5(%arg0: i32) -> (i32, i32) {
    %c0_i32 = arith.constant 0 : i32
    %c0_i32_0 = arith.constant 0 : i32
    return %arg0, %c0_i32 : i32, i32
  }
}

</mosaic_0001>

<llo_original>
// kernel: tpu_custom_call.1
$region0: #{tpu_custom_call.1}
  #allocation0 [shape = 'u32[]', space=smem, size = 0x4, offset = 0x4, fixed_abs, tag = 'smem constant byte address 0x4 - core index']
  #allocation1 [shape = 'u32[144,128]{1,0:T(1,128)}', space=vmem, size = 0x12000, scoped, tag = 'internal scratch']
  %s0 = inlined_call_operand.hbm [shape: bf16[16,256], index: 0, kind: input, shape index: {}]
  %s1 = inlined_call_operand.hbm [shape: bf16[256,256], index: 1, kind: input, shape index: {}]
  %s2 = inlined_call_operand.vmem [shape: f32[1,256], index: 2, kind: input, shape index: {}]
  %s3 = inlined_call_operand.hbm [shape: bf16[256,256], index: 3, kind: input, shape index: {}]
  %s4 = inlined_call_operand.vmem [shape: f32[1,256], index: 4, kind: input, shape index: {}]
  %s5 = inlined_call_operand.hbm [shape: f32[16,256], index: 5, kind: output, shape index: {}]
  %s6 = sld [smem:[#allocation0]]
  $region42: #{tpu_custom_call.1} parent=0
    _
  %s8 = ssub.s32 1, %s6
  %s9 = scalar_select 0, %s8, %s6
  $region1: #{tpu_custom_call.1} parent=0
    #allocation2 [shape = 'u8[8192]{0}', space=vmem, size = 0x2000, scoped, tag = 'input window, operand 0, single buffered']
    #allocation3 [shape = 's32[1]{0}', space=sflag, size = 0x4, scoped, tag = 'scoped memory for tpu_custom_call.1']
    #allocation4 [shape = 's32[1]{0}', space=sflag, size = 0x4, scoped, tag = 'scoped memory for tpu_custom_call.1']
    #allocation5 [shape = 'u8[131072]{0}', space=vmem, size = 0x20000, scoped, tag = 'input window, operand 1, single buffered']
    #allocation6 [shape = 's32[1]{0}', space=sflag, size = 0x4, scoped, tag = 'scoped memory for tpu_custom_call.1']
    #allocation7 [shape = 'u8[131072]{0}', space=vmem, size = 0x20000, scoped, tag = 'input window, operand 3, single buffered']
    #allocation8 [shape = 'u8[16384]{0}', space=vmem, size = 0x4000, scoped, tag = 'output window, operand 0, single buffered']
    %10 = vsyncpa [#allocation3], 0
    %11 = vsyncpa [#allocation6], 0
    %12 = vsyncpa [#allocation4], 0
    // Predicated region
    $region2: #{tpu_custom_call.1} parent=1 // pred_check
      _
    $region3: #{tpu_custom_call.1} parent=1 // pred_check_branch
      %14 = sbr.rel (0) target = $region5
    $region4: #{tpu_custom_call.1} parent=1 // pred_region
      %s16 = ssub.s32 256, 256
      %17 = vsyncadd [#allocation3], %s16
      %s18 = sshll.u32 [#allocation2], 4
      %s19 = int_to_ptr.vmem [resolvable:$true] %s18
      %24 = dma.hbm_to_vmem [thread:$0]  %s0, 256, %s19, [#allocation3], 128, 128, 8
    $region5: #{tpu_custom_call.1} parent=1 // pred_fallthru
      _
    // Predicated region
    $region6: #{tpu_custom_call.1} parent=1 // pred_check
      _
    $region7: #{tpu_custom_call.1} parent=1 // pred_check_branch
      %26 = sbr.rel (0) target = $region9
    $region8: #{tpu_custom_call.1} parent=1 // pred_region
      %s28 = ssub.s32 4096, 4096
      %29 = vsyncadd [#allocation6], %s28
      %s30 = sshll.u32 [#allocation5], 4
      %s31 = int_to_ptr.vmem [resolvable:$true] %s30
      %36 = dma.hbm_to_vmem [thread:$0]  %s1, 4096, %s31, [#allocation6], 128, 128, 8
    $region9: #{tpu_custom_call.1} parent=1 // pred_fallthru
      _
    // Predicated region
    $region10: #{tpu_custom_call.1} parent=1 // pred_check
      _
    $region11: #{tpu_custom_call.1} parent=1 // pred_check_branch
      %38 = sbr.rel (0) target = $region13
    $region12: #{tpu_custom_call.1} parent=1 // pred_region
      _
    $region13: #{tpu_custom_call.1} parent=1 // pred_fallthru
      _
    // Predicated region
    $region14: #{tpu_custom_call.1} parent=1 // pred_check
      _
    $region15: #{tpu_custom_call.1} parent=1 // pred_check_branch
      %40 = sbr.rel (0) target = $region17
    $region16: #{tpu_custom_call.1} parent=1 // pred_region
      %s42 = ssub.s32 4096, 4096
      %43 = vsyncadd [#allocation6], %s42
      %s44 = sshll.u32 [#allocation7], 4
      %s45 = int_to_ptr.vmem [resolvable:$true] %s44
      %50 = dma.hbm_to_vmem [thread:$0]  %s3, 4096, %s45, [#allocation6], 128, 128, 8
    $region17: #{tpu_custom_call.1} parent=1 // pred_fallthru
      _
    // Predicated region
    $region18: #{tpu_custom_call.1} parent=1 // pred_check
      _
    $region19: #{tpu_custom_call.1} parent=1 // pred_check_branch
      %52 = sbr.rel (0) target = $region21
    $region20: #{tpu_custom_call.1} parent=1 // pred_region
      _
    $region21: #{tpu_custom_call.1} parent=1 // pred_fallthru
      _
    // Predicated region
    $region22: #{tpu_custom_call.1} parent=1 // pred_check
      _
    $region23: #{tpu_custom_call.1} parent=1 // pred_check_branch
      %54 = sbr.rel (0) target = $region25
    $region24: #{tpu_custom_call.1} parent=1 // pred_region
      %55 = dma.done [#allocation3], 256
    $region25: #{tpu_custom_call.1} parent=1 // pred_fallthru
      _
    // Predicated region
    $region26: #{tpu_custom_call.1} parent=1 // pred_check
      _
    $region27: #{tpu_custom_call.1} parent=1 // pred_check_branch
      %57 = sbr.rel (0) target = $region29
    $region28: #{tpu_custom_call.1} parent=1 // pred_region
      %58 = dma.done [#allocation6], 4096
    $region29: #{tpu_custom_call.1} parent=1 // pred_fallthru
      _
    // Predicated region
    $region30: #{tpu_custom_call.1} parent=1 // pred_check
      _
    $region31: #{tpu_custom_call.1} parent=1 // pred_check_branch
      %60 = sbr.rel (0) target = $region33
    $region32: #{tpu_custom_call.1} parent=1 // pred_region
      %61 = dma.done [#allocation6], 4096
    $region33: #{tpu_custom_call.1} parent=1 // pred_fallthru
      _
    %v62 = vld [vmem:[#allocation2] sm:$0xff]
    %v63 = vld [vmem:[#allocation2 + $0x8] sm:$0xff]
    %v64 = vld [vmem:[#allocation5] sm:$0xff]
    %v65 = vld [vmem:[#allocation5 + $0x8] sm:$0xff]
    %v66 = vld [vmem:[#allocation5 + $0x10] sm:$0xff]
    %v67 = vld [vmem:[#allocation5 + $0x18] sm:$0xff]
    %v68 = vld [vmem:[#allocation5 + $0x20] sm:$0xff]
    %v69 = vld [vmem:[#allocation5 + $0x28] sm:$0xff]
    %v70 = vld [vmem:[#allocation5 + $0x30] sm:$0xff]
    %v71 = vld [vmem:[#allocation5 + $0x38] sm:$0xff]
    %v72 = vld [vmem:[#allocation5 + $0x40] sm:$0xff]
    %v73 = vld [vmem:[#allocation5 + $0x48] sm:$0xff]
    %v74 = vld [vmem:[#allocation5 + $0x50] sm:$0xff]
    %v75 = vld [vmem:[#allocation5 + $0x58] sm:$0xff]
    %v76 = vld [vmem:[#allocation5 + $0x60] sm:$0xff]
    %v77 = vld [vmem:[#allocation5 + $0x68] sm:$0xff]
    %v78 = vld [vmem:[#allocation5 + $0x70] sm:$0xff]
    %v79 = vld [vmem:[#allocation5 + $0x78] sm:$0xff]
    %v80 = vld [vmem:[#allocation5 + $0x80] sm:$0xff]
    %v81 = vld [vmem:[#allocation5 + $0x88] sm:$0xff]
    %v82 = vld [vmem:[#allocation5 + $0x90] sm:$0xff]
    %v83 = vld [vmem:[#allocation5 + $0x98] sm:$0xff]
    %v84 = vld [vmem:[#allocation5 + $0xa0] sm:$0xff]
    %v85 = vld [vmem:[#allocation5 + $0xa8] sm:$0xff]
    %v86 = vld [vmem:[#allocation5 + $0xb0] sm:$0xff]
    %v87 = vld [vmem:[#allocation5 + $0xb8] sm:$0xff]
    %v88 = vld [vmem:[#allocation5 + $0xc0] sm:$0xff]
    %v89 = vld [vmem:[#allocation5 + $0xc8] sm:$0xff]
    %v90 = vld [vmem:[#allocation5 + $0xd0] sm:$0xff]
    %v91 = vld [vmem:[#allocation5 + $0xd8] sm:$0xff]
    %v92 = vld [vmem:[#allocation5 + $0xe0] sm:$0xff]
    %v93 = vld [vmem:[#allocation5 + $0xe8] sm:$0xff]
    %v94 = vld [vmem:[#allocation5 + $0xf0] sm:$0xff]
    %v95 = vld [vmem:[#allocation5 + $0xf8] sm:$0xff]
    %v96 = vld [vmem:[%s2] sm:$0x3]
    %v98 = vlaneseq
    %v99 = vshrl.u32 %v98, 7
    %v100 = vsub.s32 0, %v99
    %v101 = vrot.slane %v96, %v100
    %v102 = vlaneseq
    %v103 = vshrl.u32 %v102, 7
    %v104 = vsub.s32 1, %v103
    %v105 = vrot.slane %v96, %v104
    %v110 = vunpack.c.l.b16 %v62
    %v111 = vunpack.c.h.b16 %v62
    %v112 = vunpack.c.l.b16 %v63
    %v113 = vunpack.c.h.b16 %v63
    %v114 = vpack.c.b16 %v112, %v110
    %v115 = vpack.c.b16 %v113, %v111
    %v150 = vunpack.c.l.b16 %v64
    %v151 = vunpack.c.h.b16 %v64
    %v152 = vunpack.c.l.b16 %v65
    %v153 = vunpack.c.h.b16 %v65
    %v154 = vunpack.c.l.b16 %v66
    %v155 = vunpack.c.h.b16 %v66
    %v156 = vunpack.c.l.b16 %v67
    %v157 = vunpack.c.h.b16 %v67
    %v158 = vunpack.c.l.b16 %v68
    %v159 = vunpack.c.h.b16 %v68
    %v160 = vunpack.c.l.b16 %v69
    %v161 = vunpack.c.h.b16 %v69
    %v162 = vunpack.c.l.b16 %v70
    %v163 = vunpack.c.h.b16 %v70
    %v164 = vunpack.c.l.b16 %v71
    %v165 = vunpack.c.h.b16 %v71
    %v166 = vunpack.c.l.b16 %v72
    %v167 = vunpack.c.h.b16 %v72
    %v168 = vunpack.c.l.b16 %v73
    %v169 = vunpack.c.h.b16 %v73
    %v170 = vunpack.c.l.b16 %v74
    %v171 = vunpack.c.h.b16 %v74
    %v172 = vunpack.c.l.b16 %v75
    %v173 = vunpack.c.h.b16 %v75
    %v174 = vunpack.c.l.b16 %v76
    %v175 = vunpack.c.h.b16 %v76
    %v176 = vunpack.c.l.b16 %v77
    %v177 = vunpack.c.h.b16 %v77
    %v178 = vunpack.c.l.b16 %v78
    %v179 = vunpack.c.h.b16 %v78
    %v180 = vunpack.c.l.b16 %v79
    %v181 = vunpack.c.h.b16 %v79
    %v182 = vunpack.c.l.b16 %v80
    %v183 = vunpack.c.h.b16 %v80
    %v184 = vunpack.c.l.b16 %v81
    %v185 = vunpack.c.h.b16 %v81
    %v186 = vunpack.c.l.b16 %v82
    %v187 = vunpack.c.h.b16 %v82
    %v188 = vunpack.c.l.b16 %v83
    %v189 = vunpack.c.h.b16 %v83
    %v190 = vunpack.c.l.b16 %v84
    %v191 = vunpack.c.h.b16 %v84
    %v192 = vunpack.c.l.b16 %v85
    %v193 = vunpack.c.h.b16 %v85
    %v194 = vunpack.c.l.b16 %v86
    %v195 = vunpack.c.h.b16 %v86
    %v196 = vunpack.c.l.b16 %v87
    %v197 = vunpack.c.h.b16 %v87
    %v198 = vunpack.c.l.b16 %v88
    %v199 = vunpack.c.h.b16 %v88
    %v200 = vunpack.c.l.b16 %v89
    %v201 = vunpack.c.h.b16 %v89
    %v202 = vunpack.c.l.b16 %v90
    %v203 = vunpack.c.h.b16 %v90
    %v204 = vunpack.c.l.b16 %v91
    %v205 = vunpack.c.h.b16 %v91
    %v206 = vunpack.c.l.b16 %v92
    %v207 = vunpack.c.h.b16 %v92
    %v208 = vunpack.c.l.b16 %v93
    %v209 = vunpack.c.h.b16 %v93
    %v210 = vunpack.c.l.b16 %v94
    %v211 = vunpack.c.h.b16 %v94
    %v212 = vunpack.c.l.b16 %v95
    %v213 = vunpack.c.h.b16 %v95
    %v214 = vpack.c.b16 %v152, %v150
    %v215 = vpack.c.b16 %v153, %v151
    %v216 = vpack.c.b16 %v156, %v154
    %v217 = vpack.c.b16 %v157, %v155
    %v218 = vpack.c.b16 %v160, %v158
    %v219 = vpack.c.b16 %v161, %v159
    %v220 = vpack.c.b16 %v164, %v162
    %v221 = vpack.c.b16 %v165, %v163
    %v222 = vpack.c.b16 %v168, %v166
    %v223 = vpack.c.b16 %v169, %v167
    %v224 = vpack.c.b16 %v172, %v170
    %v225 = vpack.c.b16 %v173, %v171
    %v226 = vpack.c.b16 %v176, %v174
    %v227 = vpack.c.b16 %v177, %v175
    %v228 = vpack.c.b16 %v180, %v178
    %v229 = vpack.c.b16 %v181, %v179
    %v230 = vpack.c.b16 %v184, %v182
    %v231 = vpack.c.b16 %v185, %v183
    %v232 = vpack.c.b16 %v188, %v186
    %v233 = vpack.c.b16 %v189, %v187
    %v234 = vpack.c.b16 %v192, %v190
    %v235 = vpack.c.b16 %v193, %v191
    %v236 = vpack.c.b16 %v196, %v194
    %v237 = vpack.c.b16 %v197, %v195
    %v238 = vpack.c.b16 %v200, %v198
    %v239 = vpack.c.b16 %v201, %v199
    %v240 = vpack.c.b16 %v204, %v202
    %v241 = vpack.c.b16 %v205, %v203
    %v242 = vpack.c.b16 %v208, %v206
    %v243 = vpack.c.b16 %v209, %v207
    %v244 = vpack.c.b16 %v212, %v210
    %v245 = vpack.c.b16 %v213, %v211
    %278 = vmatprep.subr.bf16.mxu0 %v215
    %279 = vmatpush1.bf16.msra.mxu0 %v214
    %280 = vmatprep.subr.bf16.mxu0 %v217
    %281 = vmatpush1.bf16.msra.mxu0 %v216
    %282 = vmatprep.subr.bf16.mxu0 %v219
    %283 = vmatpush1.bf16.msra.mxu0 %v218
    %284 = vmatprep.subr.bf16.mxu0 %v221
    %285 = vmatpush1.bf16.msra.mxu0 %v220
    %286 = vmatprep.subr.bf16.mxu0 %v223
    %287 = vmatpush1.bf16.msra.mxu0 %v222
    %288 = vmatprep.subr.bf16.mxu0 %v225
    %289 = vmatpush1.bf16.msra.mxu0 %v224
    %290 = vmatprep.subr.bf16.mxu0 %v227
    %291 = vmatpush1.bf16.msra.mxu0 %v226
    %292 = vmatprep.subr.bf16.mxu0 %v229
    %293 = vmatpush1.bf16.msra.mxu0 %v228
    %294 = vmatprep.subr.bf16.mxu0 %v231
    %295 = vmatpush1.bf16.msra.mxu0 %v230
    %296 = vmatprep.subr.bf16.mxu0 %v233
    %297 = vmatpush1.bf16.msra.mxu0 %v232
    %298 = vmatprep.subr.bf16.mxu0 %v235
    %299 = vmatpush1.bf16.msra.mxu0 %v234
    %300 = vmatprep.subr.bf16.mxu0 %v237
    %301 = vmatpush1.bf16.msra.mxu0 %v236
    %302 = vmatprep.subr.bf16.mxu0 %v239
    %303 = vmatpush1.bf16.msra.mxu0 %v238
    %304 = vmatprep.subr.bf16.mxu0 %v241
    %305 = vmatpush1.bf16.msra.mxu0 %v240
    %306 = vmatprep.subr.bf16.mxu0 %v243
    %307 = vmatpush1.bf16.msra.mxu0 %v242
    %308 = vmatprep.subr.bf16.mxu0 %v245
    %309 = vmatpush1.bf16.msra.mxu0 %v244
    %310 = vmatprep.mubr.bf16.mxu0 %v115
    %311 = vmatmul.mubr.bf16.gmra.mrb[0].mxu0 %v114
    %v312 = vpop.f32.mrb[0].mxu0
    %v313 = vadd.f32 %v101, %v312
    %v314 = vpop.f32.mrb[0].mxu0
    %v315 = vadd.f32 %v105, %v314
    %v316 = vpop.f32.mrb[0].mxu0
    %v317 = vadd.f32 %v101, %v316
    %v318 = vpop.f32.mrb[0].mxu0
    %v319 = vadd.f32 %v105, %v318
    %320 = vdwg.mxu0
    %v321 = vmul.f32 %v313, 0.5
    %v322 = vmul.f32 %v315, 0.5
    %v323 = vmul.f32 %v317, 0.5
    %v324 = vmul.f32 %v319, 0.5
    %v325 = vmul.f32 %v313, 0.70710677
    %v326 = vmul.f32 %v315, 0.70710677
    %v327 = vmul.f32 %v317, 0.70710677
    %v328 = vmul.f32 %v319, 0.70710677
    %v329 = vand.u32 2147483647, %v325
    %v330 = vand.u32 2147483647, %v326
    %v331 = vand.u32 2147483647, %v327
    %v332 = vand.u32 2147483647, %v328
    %v333 = vmul.f32 %v329, 0.3275911
    %v334 = vmul.f32 %v330, 0.3275911
    %v335 = vmul.f32 %v331, 0.3275911
    %v336 = vmul.f32 %v332, 0.3275911
    %v337 = vadd.f32 %v333, 1.0
    %v338 = vadd.f32 %v334, 1.0
    %v339 = vadd.f32 %v335, 1.0
    %v340 = vadd.f32 %v336, 1.0
    %v341 = vrcp.pop %v337
    %v342 = vmul.f32 1.0, %v341
    %v343 = vrcp.pop %v338
    %v344 = vmul.f32 1.0, %v343
    %v345 = vrcp.pop %v339
    %v346 = vmul.f32 1.0, %v345
    %v347 = vrcp.pop %v340
    %v348 = vmul.f32 1.0, %v347
    %v349 = vmul.f32 %v342, 1.0614054
    %v350 = vmul.f32 %v344, 1.0614054
    %v351 = vmul.f32 %v346, 1.0614054
    %v352 = vmul.f32 %v348, 1.0614054
    %v353 = vadd.f32 %v349, -1.4531521
    %v354 = vadd.f32 %v350, -1.4531521
    %v355 = vadd.f32 %v351, -1.4531521
    %v356 = vadd.f32 %v352, -1.4531521
    %v357 = vmul.f32 %v353, %v342
    %v358 = vmul.f32 %v354, %v344
    %v359 = vmul.f32 %v355, %v346
    %v360 = vmul.f32 %v356, %v348
    %v361 = vadd.f32 %v357, 1.4214138
    %v362 = vadd.f32 %v358, 1.4214138
    %v363 = vadd.f32 %v359, 1.4214138
    %v364 = vadd.f32 %v360, 1.4214138
    %v365 = vmul.f32 %v361, %v342
    %v366 = vmul.f32 %v362, %v344
    %v367 = vmul.f32 %v363, %v346
    %v368 = vmul.f32 %v364, %v348
    %v369 = vadd.f32 %v365, -0.28449672
    %v370 = vadd.f32 %v366, -0.28449672
    %v371 = vadd.f32 %v367, -0.28449672
    %v372 = vadd.f32 %v368, -0.28449672
    %v373 = vmul.f32 %v369, %v342
    %v374 = vmul.f32 %v370, %v344
    %v375 = vmul.f32 %v371, %v346
    %v376 = vmul.f32 %v372, %v348
    %v377 = vadd.f32 %v373, 0.2548296
    %v378 = vadd.f32 %v374, 0.2548296
    %v379 = vadd.f32 %v375, 0.2548296
    %v380 = vadd.f32 %v376, 0.2548296
    %v381 = vmul.f32 %v377, %v342
    %v382 = vmul.f32 %v378, %v344
    %v383 = vmul.f32 %v379, %v346
    %v384 = vmul.f32 %v380, %v348
    %v385 = vsub.f32 0.0, %v329
    %v386 = vsub.f32 0.0, %v330
    %v387 = vsub.f32 0.0, %v331
    %v388 = vsub.f32 0.0, %v332
    %v389 = vmul.f32 %v385, %v329
    %v390 = vmul.f32 %v386, %v330
    %v391 = vmul.f32 %v387, %v331
    %v392 = vmul.f32 %v388, %v332
    %v393 = vmul.f32 %v389, 1.442695
    %v394 = vpow.pop %v393
    %v395 = vmul.f32 %v390, 1.442695
    %v396 = vpow.pop %v395
    %v397 = vmul.f32 %v391, 1.442695
    %v398 = vpow.pop %v397
    %v399 = vmul.f32 %v392, 1.442695
    %v400 = vpow.pop %v399
    %v401 = vmul.f32 %v381, %v394
    %v402 = vmul.f32 %v382, %v396
    %v403 = vmul.f32 %v383, %v398
    %v404 = vmul.f32 %v384, %v400
    %v405 = vsub.f32 1.0, %v401
    %v406 = vsub.f32 1.0, %v402
    %v407 = vsub.f32 1.0, %v403
    %v408 = vsub.f32 1.0, %v404
    %vm409 = vcmp.lt.f32.partialorder %v325, 0.0
    %vm410 = vcmp.lt.f32.partialorder %v326, 0.0
    %vm411 = vcmp.lt.f32.partialorder %v327, 0.0
    %vm412 = vcmp.lt.f32.partialorder %v328, 0.0
    %v413 = vsub.f32 0.0, %v405
    %v414 = vsub.f32 0.0, %v406
    %v415 = vsub.f32 0.0, %v407
    %v416 = vsub.f32 0.0, %v408
    %v417 = vsel %vm409, %v413, %v405
    %v418 = vsel %vm410, %v414, %v406
    %v419 = vsel %vm411, %v415, %v407
    %v420 = vsel %vm412, %v416, %v408
    %v421 = vadd.f32 %v417, 1.0
    %v422 = vadd.f32 %v418, 1.0
    %v423 = vadd.f32 %v419, 1.0
    %v424 = vadd.f32 %v420, 1.0
    %v425 = vmul.f32 %v321, %v421
    %v426 = vmul.f32 %v322, %v422
    %v427 = vmul.f32 %v323, %v423
    %v428 = vmul.f32 %v324, %v424
    %v429 = vpack.c.bf16 %v427, %v425
    %v430 = vpack.c.bf16 %v428, %v426
    %v431 = vld [vmem:[#allocation7] sm:$0xff]
    %v432 = vld [vmem:[#allocation7 + $0x8] sm:$0xff]
    %v433 = vld [vmem:[#allocation7 + $0x10] sm:$0xff]
    %v434 = vld [vmem:[#allocation7 + $0x18] sm:$0xff]
    %v435 = vld [vmem:[#allocation7 + $0x20] sm:$0xff]
    %v436 = vld [vmem:[#allocation7 + $0x28] sm:$0xff]
    %v437 = vld [vmem:[#allocation7 + $0x30] sm:$0xff]
    %v438 = vld [vmem:[#allocation7 + $0x38] sm:$0xff]
    %v439 = vld [vmem:[#allocation7 + $0x40] sm:$0xff]
    %v440 = vld [vmem:[#allocation7 + $0x48] sm:$0xff]
    %v441 = vld [vmem:[#allocation7 + $0x50] sm:$0xff]
    %v442 = vld [vmem:[#allocation7 + $0x58] sm:$0xff]
    %v443 = vld [vmem:[#allocation7 + $0x60] sm:$0xff]
    %v444 = vld [vmem:[#allocation7 + $0x68] sm:$0xff]
    %v445 = vld [vmem:[#allocation7 + $0x70] sm:$0xff]
    %v446 = vld [vmem:[#allocation7 + $0x78] sm:$0xff]
    %v447 = vld [vmem:[#allocation7 + $0x80] sm:$0xff]
    %v448 = vld [vmem:[#allocation7 + $0x88] sm:$0xff]
    %v449 = vld [vmem:[#allocation7 + $0x90] sm:$0xff]
    %v450 = vld [vmem:[#allocation7 + $0x98] sm:$0xff]
    %v451 = vld [vmem:[#allocation7 + $0xa0] sm:$0xff]
    %v452 = vld [vmem:[#allocation7 + $0xa8] sm:$0xff]
    %v453 = vld [vmem:[#allocation7 + $0xb0] sm:$0xff]
    %v454 = vld [vmem:[#allocation7 + $0xb8] sm:$0xff]
    %v455 = vld [vmem:[#allocation7 + $0xc0] sm:$0xff]
    %v456 = vld [vmem:[#allocation7 + $0xc8] sm:$0xff]
    %v457 = vld [vmem:[#allocation7 + $0xd0] sm:$0xff]
    %v458 = vld [vmem:[#allocation7 + $0xd8] sm:$0xff]
    %v459 = vld [vmem:[#allocation7 + $0xe0] sm:$0xff]
    %v460 = vld [vmem:[#allocation7 + $0xe8] sm:$0xff]
    %v461 = vld [vmem:[#allocation7 + $0xf0] sm:$0xff]
    %v462 = vld [vmem:[#allocation7 + $0xf8] sm:$0xff]
    %v463 = vld [vmem:[%s4] sm:$0x3]
    %v465 = vlaneseq
    %v466 = vshrl.u32 %v465, 7
    %v467 = vsub.s32 0, %v466
    %v468 = vrot.slane %v463, %v467
    %v469 = vlaneseq
    %v470 = vshrl.u32 %v469, 7
    %v471 = vsub.s32 1, %v470
    %v472 = vrot.slane %v463, %v471
    %v507 = vunpack.c.l.b16 %v431
    %v508 = vunpack.c.h.b16 %v431
    %v509 = vunpack.c.l.b16 %v432
    %v510 = vunpack.c.h.b16 %v432
    %v511 = vunpack.c.l.b16 %v433
    %v512 = vunpack.c.h.b16 %v433
    %v513 = vunpack.c.l.b16 %v434
    %v514 = vunpack.c.h.b16 %v434
    %v515 = vunpack.c.l.b16 %v435
    %v516 = vunpack.c.h.b16 %v435
    %v517 = vunpack.c.l.b16 %v436
    %v518 = vunpack.c.h.b16 %v436
    %v519 = vunpack.c.l.b16 %v437
    %v520 = vunpack.c.h.b16 %v437
    %v521 = vunpack.c.l.b16 %v438
    %v522 = vunpack.c.h.b16 %v438
    %v523 = vunpack.c.l.b16 %v439
    %v524 = vunpack.c.h.b16 %v439
    %v525 = vunpack.c.l.b16 %v440
    %v526 = vunpack.c.h.b16 %v440
    %v527 = vunpack.c.l.b16 %v441
    %v528 = vunpack.c.h.b16 %v441
    %v529 = vunpack.c.l.b16 %v442
    %v530 = vunpack.c.h.b16 %v442
    %v531 = vunpack.c.l.b16 %v443
    %v532 = vunpack.c.h.b16 %v443
    %v533 = vunpack.c.l.b16 %v444
    %v534 = vunpack.c.h.b16 %v444
    %v535 = vunpack.c.l.b16 %v445
    %v536 = vunpack.c.h.b16 %v445
    %v537 = vunpack.c.l.b16 %v446
    %v538 = vunpack.c.h.b16 %v446
    %v539 = vunpack.c.l.b16 %v447
    %v540 = vunpack.c.h.b16 %v447
    %v541 = vunpack.c.l.b16 %v448
    %v542 = vunpack.c.h.b16 %v448
    %v543 = vunpack.c.l.b16 %v449
    %v544 = vunpack.c.h.b16 %v449
    %v545 = vunpack.c.l.b16 %v450
    %v546 = vunpack.c.h.b16 %v450
    %v547 = vunpack.c.l.b16 %v451
    %v548 = vunpack.c.h.b16 %v451
    %v549 = vunpack.c.l.b16 %v452
    %v550 = vunpack.c.h.b16 %v452
    %v551 = vunpack.c.l.b16 %v453
    %v552 = vunpack.c.h.b16 %v453
    %v553 = vunpack.c.l.b16 %v454
    %v554 = vunpack.c.h.b16 %v454
    %v555 = vunpack.c.l.b16 %v455
    %v556 = vunpack.c.h.b16 %v455
    %v557 = vunpack.c.l.b16 %v456
    %v558 = vunpack.c.h.b16 %v456
    %v559 = vunpack.c.l.b16 %v457
    %v560 = vunpack.c.h.b16 %v457
    %v561 = vunpack.c.l.b16 %v458
    %v562 = vunpack.c.h.b16 %v458
    %v563 = vunpack.c.l.b16 %v459
    %v564 = vunpack.c.h.b16 %v459
    %v565 = vunpack.c.l.b16 %v460
    %v566 = vunpack.c.h.b16 %v460
    %v567 = vunpack.c.l.b16 %v461
    %v568 = vunpack.c.h.b16 %v461
    %v569 = vunpack.c.l.b16 %v462
    %v570 = vunpack.c.h.b16 %v462
    %v571 = vpack.c.b16 %v509, %v507
    %v572 = vpack.c.b16 %v510, %v508
    %v573 = vpack.c.b16 %v513, %v511
    %v574 = vpack.c.b16 %v514, %v512
    %v575 = vpack.c.b16 %v517, %v515
    %v576 = vpack.c.b16 %v518, %v516
    %v577 = vpack.c.b16 %v521, %v519
    %v578 = vpack.c.b16 %v522, %v520
    %v579 = vpack.c.b16 %v525, %v523
    %v580 = vpack.c.b16 %v526, %v524
    %v581 = vpack.c.b16 %v529, %v527
    %v582 = vpack.c.b16 %v530, %v528
    %v583 = vpack.c.b16 %v533, %v531
    %v584 = vpack.c.b16 %v534, %v532
    %v585 = vpack.c.b16 %v537, %v535
    %v586 = vpack.c.b16 %v538, %v536
    %v587 = vpack.c.b16 %v541, %v539
    %v588 = vpack.c.b16 %v542, %v540
    %v589 = vpack.c.b16 %v545, %v543
    %v590 = vpack.c.b16 %v546, %v544
    %v591 = vpack.c.b16 %v549, %v547
    %v592 = vpack.c.b16 %v550, %v548
    %v593 = vpack.c.b16 %v553, %v551
    %v594 = vpack.c.b16 %v554, %v552
    %v595 = vpack.c.b16 %v557, %v555
    %v596 = vpack.c.b16 %v558, %v556
    %v597 = vpack.c.b16 %v561, %v559
    %v598 = vpack.c.b16 %v562, %v560
    %v599 = vpack.c.b16 %v565, %v563
    %v600 = vpack.c.b16 %v566, %v564
    %v601 = vpack.c.b16 %v569, %v567
    %v602 = vpack.c.b16 %v570, %v568
    %635 = vmatprep.subr.bf16.mxu0 %v572
    %636 = vmatpush1.bf16.msra.mxu0 %v571
    %637 = vmatprep.subr.bf16.mxu0 %v574
    %638 = vmatpush1.bf16.msra.mxu0 %v573
    %639 = vmatprep.subr.bf16.mxu0 %v576
    %640 = vmatpush1.bf16.msra.mxu0 %v575
    %641 = vmatprep.subr.bf16.mxu0 %v578
    %642 = vmatpush1.bf16.msra.mxu0 %v577
    %643 = vmatprep.subr.bf16.mxu0 %v580
    %644 = vmatpush1.bf16.msra.mxu0 %v579
    %645 = vmatprep.subr.bf16.mxu0 %v582
    %646 = vmatpush1.bf16.msra.mxu0 %v581
    %647 = vmatprep.subr.bf16.mxu0 %v584
    %648 = vmatpush1.bf16.msra.mxu0 %v583
    %649 = vmatprep.subr.bf16.mxu0 %v586
    %650 = vmatpush1.bf16.msra.mxu0 %v585
    %651 = vmatprep.subr.bf16.mxu0 %v588
    %652 = vmatpush1.bf16.msra.mxu0 %v587
    %653 = vmatprep.subr.bf16.mxu0 %v590
    %654 = vmatpush1.bf16.msra.mxu0 %v589
    %655 = vmatprep.subr.bf16.mxu0 %v592
    %656 = vmatpush1.bf16.msra.mxu0 %v591
    %657 = vmatprep.subr.bf16.mxu0 %v594
    %658 = vmatpush1.bf16.msra.mxu0 %v593
    %659 = vmatprep.subr.bf16.mxu0 %v596
    %660 = vmatpush1.bf16.msra.mxu0 %v595
    %661 = vmatprep.subr.bf16.mxu0 %v598
    %662 = vmatpush1.bf16.msra.mxu0 %v597
    %663 = vmatprep.subr.bf16.mxu0 %v600
    %664 = vmatpush1.bf16.msra.mxu0 %v599
    %665 = vmatprep.subr.bf16.mxu0 %v602
    %666 = vmatpush1.bf16.msra.mxu0 %v601
    %667 = vmatprep.mubr.bf16.mxu0 %v430
    %668 = vmatmul.mubr.bf16.gmra.mrb[0].mxu0 %v429
    %v669 = vpop.f32.mrb[0].mxu0
    %v670 = vadd.f32 %v468, %v669
    %v671 = vpop.f32.mrb[0].mxu0
    %v672 = vadd.f32 %v472, %v671
    %v673 = vpop.f32.mrb[0].mxu0
    %v674 = vadd.f32 %v468, %v673
    %v675 = vpop.f32.mrb[0].mxu0
    %v676 = vadd.f32 %v472, %v675
    %677 = vdwg.mxu0
    %678 = vst [vmem:[#allocation8] sm:$0xff] %v670
    %679 = vst [vmem:[#allocation8 + $0x8] sm:$0xff] %v672
    %680 = vst [vmem:[#allocation8 + $0x10] sm:$0xff] %v674
    %681 = vst [vmem:[#allocation8 + $0x18] sm:$0xff] %v676
    // Predicated region
    $region34: #{tpu_custom_call.1} parent=1 // pred_check
      _
    $region35: #{tpu_custom_call.1} parent=1 // pred_check_branch
      %683 = sbr.rel (0) target = $region37
    $region36: #{tpu_custom_call.1} parent=1 // pred_region
      %s685 = ssub.s32 512, 512
      %686 = vsyncadd [#allocation4], %s685
      %s687 = sshll.u32 [#allocation8], 4
      %s688 = int_to_ptr.vmem [resolvable:$true] %s687
      %693 = dma.vmem_to_hbm [thread:$0]  %s688, 512, %s5, [#allocation4], 256, 256, 16
    $region37: #{tpu_custom_call.1} parent=1 // pred_fallthru
      _
    // Predicated region
    $region38: #{tpu_custom_call.1} parent=1 // pred_check
      _
    $region39: #{tpu_custom_call.1} parent=1 // pred_check_branch
      %695 = sbr.rel (0) target = $region41
    $region40: #{tpu_custom_call.1} parent=1 // pred_region
      %696 = dma.done [#allocation4], 512
    $region41: #{tpu_custom_call.1} parent=1 // pred_fallthru
      _
    %697 = vsyncpa [#allocation3], 1
    %698 = vsyncpa [#allocation6], 1
    %699 = vsyncpa [#allocation4], 1

</llo_original>
